<compile_context>
chip_gen: v6e
topology: v6e:2x2x1
jax: 0.10.0
libtpu: 0.0.40
codegen_flags: <defaults>
</compile_context>

<pallas_src>
import jax
import jax.numpy as jnp
from jax.experimental import pallas as pl
from jax.experimental.pallas import tpu as pltpu

IN_FEATURES = 25
LANES = 128  # lane-dense padding: one full vreg row


def _unilayer_kernel(x_ref, w_ref, b_ref, o_ref):
    # x_ref: (1, 128) f32 VMEM  = [x_0..x_24, 0...]
    # w_ref: (1, 128) f32 VMEM  = [w_0..w_24, 0...]   (zero pad -> pad lanes contribute 0)
    # b_ref: (1, 1)   f32 SMEM  = bias
    # o_ref: (1, 1)   f32 SMEM  = y
    #
    # Linear(25, 1): y = sum(x * w) + b.
    # VPU elementwise multiply + XLU lane reduce; bias add is a scalar op.
    # Deliberately NOT jnp.dot / pl.dot: the MXU is the wrong unit at this size.
    prod = x_ref[...] * w_ref[...]                 # (1, 128) on the VPU
    o_ref[0, 0] = jnp.sum(prod) + b_ref[0, 0]      # lane reduce + scalar bias add


def pack_weight_row(weight):
    """Pre-pack the (1, 25) weight into a zero-padded (1, 128) row (done once)."""
    w_flat = jnp.reshape(weight, (-1,)).astype(jnp.float32)
    return jnp.pad(w_flat, (0, LANES - IN_FEATURES)).reshape(1, LANES)


@jax.jit
def unilayer_forward(x, w_row, b2d):
    """x: any shape with exactly 25 elements (x.view(1, -1) semantics).

    w_row: (1, 128) from pack_weight_row(); b2d: (1, 1) bias.
    Returns (1, 1) float32, matching the PyTorch .view(-1, 1).
    """
    x_flat = jnp.reshape(x, (-1,)).astype(jnp.float32)
    assert x_flat.shape[0] == IN_FEATURES, "unilayer expects exactly 25 input elements"

    # Single cheap pad to a lane-dense (1, 128) row; fuses into x's producer.
    x_row = jnp.pad(x_flat, (0, LANES - IN_FEATURES)).reshape(1, LANES)

    out = pl.pallas_call(
        _unilayer_kernel,
        out_shape=jax.ShapeDtypeStruct((1, 1), jnp.float32),
        in_specs=[
            pl.BlockSpec((1, LANES), lambda: (0, 0)),          # x row  (VMEM)
            pl.BlockSpec((1, LANES), lambda: (0, 0)),          # w row  (VMEM)
            pl.BlockSpec(memory_space=pltpu.SMEM),             # bias   (SMEM scalar)
        ],
        out_specs=pl.BlockSpec(memory_space=pltpu.SMEM),       # y      (SMEM scalar)
        cost_estimate=pl.CostEstimate(flops=51, transcendentals=0, bytes_accessed=1060),
    )(x_row, w_row, b2d)

    return out  # already (1, 1)


def init_params(key):
    """Deterministic init mimicking nn.Linear(25, 1): U(-1/sqrt(25), 1/sqrt(25))."""
    kw, kb = jax.random.split(key)
    bound = 1.0 / jnp.sqrt(25.0)
    weight = jax.random.uniform(kw, (1, IN_FEATURES), jnp.float32, -bound, bound)
    bias = jax.random.uniform(kb, (1,), jnp.float32, -bound, bound)
    return weight, bias


if __name__ == "__main__":
    key = jax.random.PRNGKey(0)
    k_x, k_p = jax.random.split(key)

    # Input: 25 elements total (e.g. a 5x5 feature map), consistent with Linear(25, 1).
    x = jax.random.normal(k_x, (5, 5), jnp.float32)
    weight, bias = init_params(k_p)

    w_row = pack_weight_row(weight)                      # packed once, reusable
    b2d = jnp.reshape(bias, (1, 1)).astype(jnp.float32)  # (1, 1) SMEM scalar input

    y = unilayer_forward(x, w_row, b2d)
    y = jax.block_until_ready(y)

    # Pure-JAX reference check (this is also the recommended "just inline it" form).
    y_ref = jnp.reshape(jnp.reshape(x, (1, -1)) @ weight.T + bias, (-1, 1))
    assert y.shape == (1, 1)
    assert jnp.allclose(y, y_ref, atol=1e-5, rtol=1e-5)

    print("KERNEL_OK")
</pallas_src>

<mosaic_0001>
module attributes {stable_mosaic.version = 11 : i64} {
  func.func @_unilayer_kernel(%arg0: memref<1x128xf32, #tpu.memory_space<vmem>>, %arg1: memref<1x128xf32, #tpu.memory_space<vmem>>, %arg2: memref<1x1xf32, #tpu.memory_space<smem>>, %arg3: memref<1x1xf32, #tpu.memory_space<smem>>) attributes {dimension_semantics = [], scalar_prefetch = 0 : i64, scratch_operands = 0 : i64, tpu.core_type = #tpu.core_type<tc>} {
    %c0 = arith.constant 0 : index
    %c0_0 = arith.constant 0 : index
    %0 = vector.load %arg0[%c0, %c0_0] : memref<1x128xf32, #tpu.memory_space<vmem>>, vector<1x128xf32>
    %c0_1 = arith.constant 0 : index
    %c0_2 = arith.constant 0 : index
    %1 = vector.load %arg1[%c0_1, %c0_2] : memref<1x128xf32, #tpu.memory_space<vmem>>, vector<1x128xf32>
    %2 = arith.mulf %0, %1 : vector<1x128xf32>
    %3 = vector.shape_cast %2 : vector<1x128xf32> to vector<1x1x128xf32>
    %cst = arith.constant dense<0.000000e+00> : vector<1xf32>
    %4 = vector.multi_reduction <add>, %3, %cst [1, 2] : vector<1x1x128xf32> to vector<1xf32>
    %5 = vector.shape_cast %4 : vector<1xf32> to vector<1x1x1xf32>
    %6 = vector.extract %5[0, 0, 0] : f32 from vector<1x1x1xf32>
    %c0_3 = arith.constant 0 : index
    %c0_4 = arith.constant 0 : index
    %7 = memref.load %arg2[%c0_3, %c0_4] : memref<1x1xf32, #tpu.memory_space<smem>>
    %8 = arith.addf %6, %7 : f32
    %c0_5 = arith.constant 0 : index
    %c0_6 = arith.constant 0 : index
    %9 = memref.load %arg3[%c0_5, %c0_6] : memref<1x1xf32, #tpu.memory_space<smem>>
    memref.store %8, %arg3[%c0_5, %c0_6] : memref<1x1xf32, #tpu.memory_space<smem>>
    return
  }
}

</mosaic_0001>

<llo_original>
// kernel: unilayer_forward.1
$region0: #{unilayer_forward.1}
  #allocation0 [shape = 'u32[]', space=smem, size = 0x4, offset = 0x4, fixed_abs, tag = 'smem constant byte address 0x4 - core index']
  #allocation1 [shape = 'u32[144,128]{1,0:T(1,128)}', space=vmem, size = 0x12000, scoped, tag = 'internal scratch']
  #allocation2 [shape = 'f32[1,1]{1,0:T(1,128)S(6)}', space=smem, size = 0x200, scoped, tag = 'scoped memory for unilayer_forward.1']
  %s0 = inlined_call_operand.vmem [shape: f32[1,128], index: 0, kind: input, shape index: {}]
  %s1 = inlined_call_operand.vmem [shape: f32[1,128], index: 1, kind: input, shape index: {}]
  %s2 = inlined_call_operand.<no memory space> [shape: f32[1,1], index: 2, kind: input, shape index: {}]
  %s3 = inlined_call_operand.hbm [shape: f32[1,1], index: 3, kind: output, shape index: {}]
  %s4 = sld [smem:[#allocation0]]
  $region22: #{unilayer_forward.1} parent=0
    _
  %s6 = ssub.s32 1, %s4
  %s7 = scalar_select 0, %s6, %s4
  %8 = sst [smem:[#allocation2]] %s2
  $region1: #{unilayer_forward.1} parent=0
    #allocation3 [shape = 'u8[512]{0}', space=smem, size = 0x200, scoped, tag = 'output window, operand 0, single buffered']
    #allocation4 [shape = 's32[1]{0}', space=sflag, size = 0x4, scoped, tag = 'scoped memory for unilayer_forward.1']
    %9 = vsyncpa [#allocation4], 0
    // Predicated region
    $region2: #{unilayer_forward.1} parent=1 // pred_check
      _
    $region3: #{unilayer_forward.1} parent=1 // pred_check_branch
      %11 = sbr.rel (0) target = $region5
    $region4: #{unilayer_forward.1} parent=1 // pred_region
      _
    $region5: #{unilayer_forward.1} parent=1 // pred_fallthru
      _
    // Predicated region
    $region6: #{unilayer_forward.1} parent=1 // pred_check
      _
    $region7: #{unilayer_forward.1} parent=1 // pred_check_branch
      %13 = sbr.rel (0) target = $region9
    $region8: #{unilayer_forward.1} parent=1 // pred_region
      _
    $region9: #{unilayer_forward.1} parent=1 // pred_fallthru
      _
    // Predicated region
    $region10: #{unilayer_forward.1} parent=1 // pred_check
      _
    $region11: #{unilayer_forward.1} parent=1 // pred_check_branch
      %15 = sbr.rel (0) target = $region13
    $region12: #{unilayer_forward.1} parent=1 // pred_region
      _
    $region13: #{unilayer_forward.1} parent=1 // pred_fallthru
      _
    %v16 = vld [vmem:[%s0] sm:$0x1]
    %v17 = vld [vmem:[%s1] sm:$0x1]
    %v18 = vmul.f32 %v16, %v17
    %vm19 = vcmask 1040384
    %v20 = vsel %vm19, %v18, 0.0
    %21 = vadd.xlane.f32.xlu0 %v20
    %v22 = vpop.xlane.xlu0 %21
    %v23 = vrot.slane %v22, 4
    %v24 = vadd.f32 %v22, %v23
    %v25 = vrot.slane %v24, 2
    %v26 = vadd.f32 %v24, %v25
    %v27 = vrot.slane %v26, 1
    %v28 = vadd.f32 %v26, %v27
    %s29 = vtos %v28
    %s30 = sld [smem:[#allocation2]]
    %s31 = sadd.f32 %s29, %s30
    %s32 = scalar_lea.smem [#allocation3], 0
    %33 = sst [smem:[%s32]] %s31
    // Predicated region
    $region14: #{unilayer_forward.1} parent=1 // pred_check
      _
    $region15: #{unilayer_forward.1} parent=1 // pred_check_branch
      %35 = sbr.rel (0) target = $region17
    $region16: #{unilayer_forward.1} parent=1 // pred_region
      %s37 = ssub.s32 16, 16
      %38 = vsyncadd [#allocation4], %s37
      %41 = dma.smem_to_hbm [#allocation3], 16, %s3, [#allocation4]
    $region17: #{unilayer_forward.1} parent=1 // pred_fallthru
      _
    // Predicated region
    $region18: #{unilayer_forward.1} parent=1 // pred_check
      _
    $region19: #{unilayer_forward.1} parent=1 // pred_check_branch
      %43 = sbr.rel (0) target = $region21
    $region20: #{unilayer_forward.1} parent=1 // pred_region
      %44 = dma.done [#allocation4], 16
    $region21: #{unilayer_forward.1} parent=1 // pred_fallthru
      _
    %45 = sfence
    %46 = vsyncpa [#allocation4], 1

</llo_original>
